<compile_context>
chip_gen: v5e
topology: v5e:2x2
jax: 0.10.0
libtpu: 0.0.40
codegen_flags: <defaults>
</compile_context>

<pallas_src>
import jax
import jax.numpy as jnp
from jax import lax
from jax.experimental import pallas as pl
from jax.experimental.pallas import tpu as pltpu


def _ce_kernel(logits_ref, targets_ref, loss_ref):
    """Per-row cross-entropy for one (tm, C) tile of logits."""
    x = logits_ref[...]                                    # (tm, C) native dtype
    t = targets_ref[...]                                   # (tm, 1) int32

    # Row max in the native dtype (exact); shift + exp + sum in f32.
    m = jnp.max(x, axis=-1, keepdims=True)                 # (tm, 1)
    ex = jnp.exp((x - m).astype(jnp.float32))              # (tm, C) f32
    lse = jnp.log(jnp.sum(ex, axis=-1, keepdims=True)) + m.astype(jnp.float32)

    # One-hot gather of the target logit (no dynamic per-row gather on TPU).
    col = lax.broadcasted_iota(jnp.int32, (1, x.shape[-1]), 1)   # (1, C)
    tgt_logit = jnp.sum(jnp.where(col == t, x, 0), axis=-1,
                        keepdims=True).astype(jnp.float32)       # (tm, 1)

    loss_ref[...] = lse - tgt_logit                        # (tm, 1) f32


def _vmem_capacity_bytes():
    try:
        return int(pltpu.get_tpu_info().vmem_capacity_bytes)
    except Exception:
        return 64 * 1024 * 1024        # conservative fallback (v7x per-core VMEM)


# TODO(synk): PyTorch's default ignore_index=-100, class weights and label
# smoothing are not handled; targets must be valid class indices in [0, C).
def cross_entropy_loss(outputs, targets):
    """outputs: (..., C) float; targets: (...) int. Returns scalar f32 mean CE."""
    C = outputs.shape[-1]
    logits = outputs.reshape(-1, C)
    tgt = targets.reshape(-1).astype(jnp.int32)
    N = logits.shape[0]

    itemsize = jnp.dtype(logits.dtype).itemsize
    sub = 8 * max(1, 4 // itemsize)            # sublane multiple: 8 f32, 16 bf16

    # Ensure at least one full sublane group of rows (tiny pad for tiny N only).
    n_rows = N
    if n_rows < sub:
        pad = sub - n_rows
        logits = jnp.pad(logits, ((0, pad), (0, 0)))
        tgt = jnp.pad(tgt, (0, pad))
        n_rows = sub
    tgt2d = tgt.reshape(-1, 1)

    # --- generation-aware tiling --------------------------------------------
    vmem_cap = _vmem_capacity_bytes()
    is_small_vmem = vmem_cap <= 80 * 1024 * 1024           # v7x-class (64 MiB/TC)
    block_budget = (2 if is_small_vmem else 4) * 1024 * 1024

    tm = (block_budget // (C * itemsize)) // sub * sub
    tm = max(sub, tm)
    tm = min(tm, (n_rows // sub) * sub)        # block <= array; edge block is partial
    grid = pl.cdiv(n_rows, tm)

    # VMEM request: 2x double-buffered native input block + f32 temporaries
    # (exp tile & friends) + targets/output + slack, capped well below the
    # per-core capacity (<= ~40 MiB on v7x, <= ~80 MiB on v5e/v6e).
    # TODO(synk): very large C (single row block > budget) would need a
    # class-axis split with an online LSE; not implemented here.
    est = 2 * tm * C * itemsize + 4 * tm * C * 4 + 8 * tm * 4 + (2 << 20)
    vmem_limit = int(max(32 * 1024 * 1024, min(est, vmem_cap * 5 // 8)))

    per_row = pl.pallas_call(
        _ce_kernel,
        out_shape=jax.ShapeDtypeStruct((n_rows, 1), jnp.float32),
        grid_spec=pltpu.PrefetchScalarGridSpec(
            num_scalar_prefetch=0,
            grid=(grid,),
            in_specs=[
                pl.BlockSpec((tm, C), lambda i: (i, 0)),   # logits row tile (full C)
                pl.BlockSpec((tm, 1), lambda i: (i, 0)),   # targets row tile
            ],
            out_specs=pl.BlockSpec((tm, 1), lambda i: (i, 0)),
        ),
        compiler_params=pltpu.CompilerParams(
            dimension_semantics=("parallel",),    # no carried state -> megacore OK
            vmem_limit_bytes=vmem_limit,
        ),
    )(logits, tgt2d)

    # Rows >= N (edge-block remainder / tiny-N pad) are discarded here; the
    # reduction and divide-by-true-N happen in f32 in the wrapper.
    return jnp.sum(per_row[:N, 0]) / jnp.float32(N)


def _reference(outputs, targets):
    C = outputs.shape[-1]
    logits = outputs.reshape(-1, C).astype(jnp.float32)
    tgt = targets.reshape(-1).astype(jnp.int32)
    logp = jax.nn.log_softmax(logits, axis=-1)
    nll = -jnp.take_along_axis(logp, tgt[:, None], axis=-1)[:, 0]
    return jnp.mean(nll)


if __name__ == "__main__":
    key = jax.random.PRNGKey(0)
    k1, k2 = jax.random.split(key)

    # Module's forward implies (batch, seq, num_classes) logits + (batch, seq) targets.
    batch, seq, num_classes = 2, 8, 32
    outputs = jax.random.normal(k1, (batch, seq, num_classes), dtype=jnp.float32)
    targets = jax.random.randint(k2, (batch, seq), 0, num_classes, dtype=jnp.int32)

    loss = jax.block_until_ready(cross_entropy_loss(outputs, targets))
    ref = jax.block_until_ready(_reference(outputs, targets))
    assert jnp.allclose(loss, ref, atol=1e-5, rtol=1e-5), (loss, ref)

    # Non-tile-aligned row count + bf16 logits (exercises the partial edge
    # block and the native-dtype compute path).
    k3, k4 = jax.random.split(k2)
    outputs2 = jax.random.normal(k3, (3, 37, 256), dtype=jnp.bfloat16)
    targets2 = jax.random.randint(k4, (3, 37), 0, 256, dtype=jnp.int32)
    loss2 = jax.block_until_ready(cross_entropy_loss(outputs2, targets2))
    ref2 = jax.block_until_ready(_reference(outputs2, targets2))
    assert jnp.allclose(loss2, ref2, atol=2e-2, rtol=2e-2), (loss2, ref2)

    print("KERNEL_OK")
</pallas_src>

<mosaic_0001>
module attributes {stable_mosaic.version = 11 : i64} {
  func.func @_ce_kernel(%arg0: i32, %arg1: memref<16x32xf32, #tpu.memory_space<vmem>>, %arg2: memref<16x1xi32, #tpu.memory_space<vmem>>, %arg3: memref<16x1xf32, #tpu.memory_space<vmem>>) attributes {dimension_semantics = [#tpu.dimension_semantics<parallel>], iteration_bounds = array<i64: 1>, scalar_prefetch = 0 : i64, scratch_operands = 0 : i64, tpu.core_type = #tpu.core_type<tc>, window_params = [{transform_indices = @transform_0, window_bounds = array<i64: 16, 32>}, {transform_indices = @transform_1, window_bounds = array<i64: 16, 1>}, {transform_indices = @transform_2, window_bounds = array<i64: 16, 1>}]} {
    %c0 = arith.constant 0 : index
    %c0_0 = arith.constant 0 : index
    %0 = vector.load %arg1[%c0, %c0_0] : memref<16x32xf32, #tpu.memory_space<vmem>>, vector<16x32xf32>
    %c0_1 = arith.constant 0 : index
    %c0_2 = arith.constant 0 : index
    %1 = vector.load %arg2[%c0_1, %c0_2] : memref<16x1xi32, #tpu.memory_space<vmem>>, vector<16x1xi32>
    %cst = arith.constant dense<0xFF800000> : vector<16xf32>
    %2 = vector.multi_reduction <maximumf>, %0, %cst [1] : vector<16x32xf32> to vector<16xf32>
    %3 = vector.shape_cast %2 : vector<16xf32> to vector<16x1xf32>
    %4 = vector.broadcast %3 : vector<16x1xf32> to vector<16x32xf32>
    %5 = arith.subf %0, %4 : vector<16x32xf32>
    %6 = math.exp %5 : vector<16x32xf32>
    %cst_3 = arith.constant dense<0.000000e+00> : vector<16xf32>
    %7 = vector.multi_reduction <add>, %6, %cst_3 [1] : vector<16x32xf32> to vector<16xf32>
    %8 = vector.shape_cast %7 : vector<16xf32> to vector<16x1xf32>
    %9 = math.log %8 : vector<16x1xf32>
    %10 = arith.addf %9, %3 : vector<16x1xf32>
    %11 = tpu.iota {dimensions = array<i32: 1>} : vector<1x32xi32>
    %12 = vector.broadcast %11 : vector<1x32xi32> to vector<16x32xi32>
    %13 = vector.broadcast %1 : vector<16x1xi32> to vector<16x32xi32>
    %14 = arith.cmpi eq, %12, %13 : vector<16x32xi32>
    %c0_i32 = arith.constant 0 : i32
    %15 = arith.sitofp %c0_i32 : i32 to f32
    %16 = vector.broadcast %15 : f32 to vector<16x32xf32>
    %17 = arith.select %14, %0, %16 : vector<16x32xi1>, vector<16x32xf32>
    %cst_4 = arith.constant dense<0.000000e+00> : vector<16xf32>
    %18 = vector.multi_reduction <add>, %17, %cst_4 [1] : vector<16x32xf32> to vector<16xf32>
    %19 = vector.shape_cast %18 : vector<16xf32> to vector<16x1xf32>
    %20 = arith.subf %10, %19 : vector<16x1xf32>
    %c0_5 = arith.constant 0 : index
    %c0_6 = arith.constant 0 : index
    %21 = vector.load %arg3[%c0_5, %c0_6] : memref<16x1xf32, #tpu.memory_space<vmem>>, vector<16x1xf32>
    tpu.vector_store %arg3[%c0_5, %c0_6], %20 {strides = array<i32>} : memref<16x1xf32, #tpu.memory_space<vmem>>, vector<16x1xf32>,
    return
  }
  func.func @transform_0(%arg0: i32) -> (i32, i32) {
    %c0_i32 = arith.constant 0 : i32
    %c0_i32_0 = arith.constant 0 : i32
    return %arg0, %c0_i32 : i32, i32
  }
  func.func @transform_1(%arg0: i32) -> (i32, i32) {
    %c0_i32 = arith.constant 0 : i32
    %c0_i32_0 = arith.constant 0 : i32
    return %arg0, %c0_i32 : i32, i32
  }
  func.func @transform_2(%arg0: i32) -> (i32, i32) {
    %c0_i32 = arith.constant 0 : i32
    %c0_i32_0 = arith.constant 0 : i32
    return %arg0, %c0_i32 : i32, i32
  }
}

</mosaic_0001>

<llo_original>
// kernel: tpu_custom_call.1
$region0: #{tpu_custom_call.1}
  #allocation0 [shape = 'u32[]', space=smem, size = 0x4, offset = 0x4, fixed_abs, tag = 'smem constant byte address 0x4 - core index']
  #allocation1 [shape = 'u32[72,128]{1,0:T(1,128)}', space=vmem, size = 0x9000, scoped, tag = 'internal scratch']
  %s0 = inlined_call_operand.vmem [shape: f32[16,32], index: 0, kind: input, shape index: {}]
  %s1 = inlined_call_operand.vmem [shape: s32[16,1], index: 1, kind: input, shape index: {}]
  %s2 = inlined_call_operand.vmem [shape: f32[16,1], index: 2, kind: output, shape index: {}]
  %s3 = sld [smem:[#allocation0]]
  $region18: #{tpu_custom_call.1} parent=0
    _
  %s5 = ssub.s32 1, %s3
  %s6 = scalar_select 0, %s5, %s3
  // Predicated region
  $region2: #{tpu_custom_call.1} parent=0 // pred_check
    _
  $region3: #{tpu_custom_call.1} parent=0 // pred_check_branch
    %8 = sbr.rel (0) target = $region5
  $region4: #{tpu_custom_call.1} parent=0 // pred_region
    _
  $region5: #{tpu_custom_call.1} parent=0 // pred_fallthru
    _
  // Predicated region
  $region6: #{tpu_custom_call.1} parent=0 // pred_check
    _
  $region7: #{tpu_custom_call.1} parent=0 // pred_check_branch
    %10 = sbr.rel (0) target = $region9
  $region8: #{tpu_custom_call.1} parent=0 // pred_region
    _
  $region9: #{tpu_custom_call.1} parent=0 // pred_fallthru
    _
  %v11 = vld [vmem:[%s0] sm:$0xff]
  %v12 = vld [vmem:[%s0 + $0x8] sm:$0xff]
  %v13 = vld [vmem:[%s1] sm:$0xff]
  %v14 = vld [vmem:[%s1 + $0x8] sm:$0xff]
  %vm15 = vcmask 261120
  %v16 = vsel %vm15, %v11, -inf
  %17 = vmax.xlane.f32.xlu0 %v16
  %v18 = vpop.xlane.xlu0 %17
  %v19 = vsel %vm15, %v12, -inf
  %20 = vmax.xlane.f32.xlu0 %v19
  %v21 = vpop.xlane.xlu0 %20
  %v22 = vsub.f32 %v11, %v18
  %v23 = vsub.f32 %v12, %v21
  %v24 = vmul.f32 %v22, 1.442695
  %v25 = vpow.pop %v24
  %v26 = vmul.f32 %v23, 1.442695
  %v27 = vpow.pop %v26
  %v28 = vsel %vm15, %v25, 0.0
  %29 = vadd.xlane.f32.xlu0 %v28
  %v30 = vpop.xlane.xlu0 %29
  %v31 = vsel %vm15, %v27, 0.0
  %32 = vadd.xlane.f32.xlu0 %v31
  %v33 = vpop.xlane.xlu0 %32
  %v34 = vlog2.pop %v30
  %v35 = vmul.f32 %v34, 0.6931472
  %v36 = vlog2.pop %v33
  %v37 = vmul.f32 %v36, 0.6931472
  %v38 = vadd.f32 %v35, %v18
  %v39 = vadd.f32 %v37, %v21
  %v40 = vlaneseq
  %v41 = vand.u32 %v40, 127
  %42 = vset.pattern.permute.xlu0 0
  %43 = vperm.xlu0 %42, %v13
  %v44 = vpop.permute.xlu0 %43
  %45 = vset.pattern.permute.xlu0 0
  %46 = vperm.xlu0 %45, %v14
  %v47 = vpop.permute.xlu0 %46
  %vm48 = vcmp.eq.s32.totalorder %v41, %v44
  %vm49 = vcmp.eq.s32.totalorder %v41, %v47
  %v50 = vsel %vm48, %v11, 0.0
  %v51 = vsel %vm49, %v12, 0.0
  %v52 = vsel %vm15, %v50, 0.0
  %53 = vadd.xlane.f32.xlu0 %v52
  %v54 = vpop.xlane.xlu0 %53
  %v55 = vsel %vm15, %v51, 0.0
  %56 = vadd.xlane.f32.xlu0 %v55
  %v57 = vpop.xlane.xlu0 %56
  %v58 = vsub.f32 %v38, %v54
  %v59 = vsub.f32 %v39, %v57
  %vm60 = vcmask 7168
  %61 = vst.msk [vmem:[%s2] sm:$0xff] %vm60, %v58
  %62 = vst.msk [vmem:[%s2 + $0x8] sm:$0xff] %vm60, %v59
  // Predicated region
  $region10: #{tpu_custom_call.1} parent=0 // pred_check
    _
  $region11: #{tpu_custom_call.1} parent=0 // pred_check_branch
    %64 = sbr.rel (0) target = $region13
  $region12: #{tpu_custom_call.1} parent=0 // pred_region
    _
  $region13: #{tpu_custom_call.1} parent=0 // pred_fallthru
    _
  // Predicated region
  $region14: #{tpu_custom_call.1} parent=0 // pred_check
    _
  $region15: #{tpu_custom_call.1} parent=0 // pred_check_branch
    %66 = sbr.rel (0) target = $region17
  $region16: #{tpu_custom_call.1} parent=0 // pred_region
    _
  $region17: #{tpu_custom_call.1} parent=0 // pred_fallthru
    _

</llo_original>
